<compile_context>
chip_gen: v6e
topology: v6e:2x2x1
jax: 0.10.0
libtpu: 0.0.40
codegen_flags: <defaults>
</compile_context>

<pallas_src>
import jax
import jax.numpy as jnp
from jax.experimental import pallas as pl
from jax.experimental.pallas import tpu as pltpu


def _round_up(x, m):
    return (x + m - 1) // m * m


# ----------------------------------------------------------------------------
# Pallas kernel: fused (collapsed) affine -> relu -> smax_fc -> log_softmax
# ----------------------------------------------------------------------------
def fnn_fused_kernel(x_ref, weff_ref, beff_ref, wft_ref, bf_ref, out_ref):
    """x_ref    : (TN, D_m)   bf16 row tile of the flattened (S*B, D_m) input
       weff_ref : (D_m, D_m)  bf16  W1^T @ W1^T  (two linear1's collapsed)
       beff_ref : (1, D_m)    f32   b1 @ W1^T + b1
       wft_ref  : (D_m, Cp)   bf16  smax_fc weight^T, class dim zero-padded to 128
       bf_ref   : (1, Cp)     f32   smax_fc bias, padded entries are -inf
       out_ref  : (TN, Cp)    f32   log-probabilities (padded classes = -inf)
    """
    # Collapsed linear1∘linear1 on the MXU (bf16 operands, f32 accumulate).
    h = jnp.dot(x_ref[...], weff_ref[...], preferred_element_type=jnp.float32)
    h = jnp.maximum(h + beff_ref[...], 0.0)
    # nn.Dropout in eval mode is the identity — nothing to do here.

    logits = jnp.dot(h.astype(jnp.bfloat16), wft_ref[...],
                     preferred_element_type=jnp.float32) + bf_ref[...]

    # Numerically-stable log_softmax along the (lane-dense, padded) class axis.
    # Padded logits are exactly -inf, so exp() contributes 0 and the real classes
    # are unchanged.
    m = jnp.max(logits, axis=-1, keepdims=True)
    z = logits - m
    out_ref[...] = z - jnp.log(jnp.sum(jnp.exp(z), axis=-1, keepdims=True))


# ----------------------------------------------------------------------------
# One-time parameter preparation (NOT per forward call)
# ----------------------------------------------------------------------------
def prepare_params(raw):
    w1t = jnp.transpose(raw["w1"]).astype(jnp.float32)      # (D_m, D_e)
    b1 = raw["b1"].astype(jnp.float32)                       # (D_e,)
    D_m, D_e = w1t.shape
    assert D_e == D_m, "FNNModel.forward requires D_m == D_e (linear1 applied twice)"

    # Collapse linear1(linear1(x)) into a single affine map.
    w_eff = w1t @ w1t                                         # (D_m, D_e)
    b_eff = b1 @ w1t + b1                                     # (D_e,)

    wft = jnp.transpose(raw["w_fc"]).astype(jnp.float32)      # (D_h, C)
    bf = raw["b_fc"].astype(jnp.float32)                      # (C,)
    D_h, C = wft.shape
    assert D_h == D_e, "FNNModel.forward requires D_h == D_e (smax_fc on linear1 output)"

    # Lane-dense class dimension: zero weight columns, -inf bias for padded classes.
    Cp = _round_up(C, 128)
    wft_p = jnp.zeros((D_h, Cp), jnp.float32).at[:, :C].set(wft)
    bf_p = jnp.full((Cp,), -jnp.inf, jnp.float32).at[:C].set(bf)

    return {
        "w_eff": w_eff.astype(jnp.bfloat16),                  # bf16 MXU operand
        "b_eff": b_eff.reshape(1, -1),                        # f32
        "wft": wft_p.astype(jnp.bfloat16),                    # bf16 MXU operand
        "bf": bf_p.reshape(1, -1),                            # f32 (-inf padded)
        "n_classes": C,
    }


# ----------------------------------------------------------------------------
# Forward wrapper
# ----------------------------------------------------------------------------
def fnn_model_forward(U, umask, prep):
    """Pallas implementation of FNNModel.forward.

    U -> (seq_len, batch, D_m); umask -> (batch, seq_len) (unused by the forward).
    Returns (log_prob, alpha, alpha_f, alpha_b) mirroring the PyTorch module.
    """
    del umask  # not used by FNNModel.forward
    S, B, D_m = U.shape
    w_eff, b_eff, wft, bf = prep["w_eff"], prep["b_eff"], prep["wft"], prep["bf"]
    C = prep["n_classes"]
    Cp = wft.shape[1]
    assert w_eff.shape == (D_m, D_m), "FNNModel.forward requires D_m == D_e == D_h"

    N = S * B
    # Single reshape+cast of the input (no row/column padding copies in HBM).
    x = U.reshape(N, D_m).astype(jnp.bfloat16)

    # Row tile: multiple of 8 sublanes, capped at 1024 rows; chosen so the
    # "parallel" grid has >= 2 steps whenever N > 8 (keeps both v7x TCs busy).
    TN = max(8, min(1024, _round_up(pl.cdiv(N, 2), 8)))
    grid = pl.cdiv(N, TN)   # partial boundary tile handled by the pipeline

    out = pl.pallas_call(
        fnn_fused_kernel,
        out_shape=jax.ShapeDtypeStruct((N, Cp), jnp.float32),
        grid_spec=pltpu.PrefetchScalarGridSpec(
            num_scalar_prefetch=0,
            grid=(grid,),
            in_specs=[
                pl.BlockSpec((TN, D_m), lambda i: (i, 0)),    # pipelined input rows
                pl.BlockSpec((D_m, D_m), lambda i: (0, 0)),   # VMEM-resident weights
                pl.BlockSpec((1, D_m), lambda i: (0, 0)),
                pl.BlockSpec((D_m, Cp), lambda i: (0, 0)),
                pl.BlockSpec((1, Cp), lambda i: (0, 0)),
            ],
            out_specs=pl.BlockSpec((TN, Cp), lambda i: (i, 0)),
        ),
        compiler_params=pltpu.CompilerParams(
            dimension_semantics=("parallel",)),
        # NOTE: for realistic D_m (>= a few hundred) add vmem_limit_bytes here (and
        # single-buffer the constant-index weight specs); at these sizes the whole
        # working set is a few KiB so the per-generation defaults are ample.
    )(x, w_eff, b_eff, wft, bf)

    log_prob = out[:, :C].reshape(S, B, C)
    return log_prob, [], [], []


# ----------------------------------------------------------------------------
# Pure-JAX references (for in-script verification)
# ----------------------------------------------------------------------------
def fnn_model_forward_ref(U, umask, raw):
    """Exact f32 semantics of the PyTorch forward (dropout = eval identity)."""
    del umask
    emotions = U @ raw["w1"].T + raw["b1"]
    hidden = jax.nn.relu(emotions @ raw["w1"].T + raw["b1"])
    logits = hidden @ raw["w_fc"].T + raw["b_fc"]
    return jax.nn.log_softmax(logits, axis=-1)


def fnn_model_forward_matched_ref(U, prep):
    """Same math as the kernel (bf16 operands, f32 accumulate) in plain JAX."""
    S, B, D_m = U.shape
    C = prep["n_classes"]
    x = U.reshape(S * B, D_m).astype(jnp.bfloat16)
    h = jnp.dot(x, prep["w_eff"], preferred_element_type=jnp.float32) + prep["b_eff"]
    h = jnp.maximum(h, 0.0)
    logits = jnp.dot(h.astype(jnp.bfloat16), prep["wft"],
                     preferred_element_type=jnp.float32) + prep["bf"]
    m = jnp.max(logits, axis=-1, keepdims=True)
    z = logits - m
    lp = z - jnp.log(jnp.sum(jnp.exp(z), axis=-1, keepdims=True))
    return lp[:, :C].reshape(S, B, C)


# ----------------------------------------------------------------------------
# Deterministic parameter init + demo run
# ----------------------------------------------------------------------------
def init_params(key, D_m, D_e, D_h, n_classes):
    keys = iter(jax.random.split(key, 8))

    def uni(shape, bound):
        return jax.random.uniform(next(keys), shape, jnp.float32, -bound, bound)

    k1 = 1.0 / jnp.sqrt(D_m)
    k2 = 1.0 / jnp.sqrt(D_e)
    kf = 1.0 / jnp.sqrt(D_h)
    return {
        "w1": uni((D_e, D_m), k1), "b1": uni((D_e,), k1),
        # linear2 exists in the module but is never used by forward().
        "w2": uni((D_h, D_e), k2), "b2": uni((D_h,), k2),
        "w_fc": uni((n_classes, D_h), kf), "b_fc": uni((n_classes,), kf),
    }
    # TODO(synk): MatchingAttention is constructed when attention=True but is never
    #             invoked by FNNModel.forward, so it is intentionally not implemented.


if __name__ == "__main__":
    seq_len, batch = 8, 2
    # FNNModel.forward requires D_m == D_e == D_h (linear1 applied twice, then smax_fc)
    D_m = D_e = D_h = 32
    n_classes = 7

    key = jax.random.PRNGKey(0)
    k_u, k_p = jax.random.split(key)
    U = jax.random.normal(k_u, (seq_len, batch, D_m), jnp.float32)
    umask = jnp.ones((batch, seq_len), jnp.float32)

    raw_params = init_params(k_p, D_m, D_e, D_h, n_classes)
    prep = prepare_params(raw_params)   # one-time weight prep (collapse + pad + bf16)

    log_prob, alpha, alpha_f, alpha_b = fnn_model_forward(U, umask, prep)
    log_prob = jax.block_until_ready(log_prob)

    assert log_prob.shape == (seq_len, batch, n_classes)

    # Tight check vs. a plain-JAX reference using identical bf16 quantization.
    ref_matched = jax.block_until_ready(fnn_model_forward_matched_ref(U, prep))
    err_matched = float(jnp.max(jnp.abs(log_prob - ref_matched)))
    assert err_matched < 1e-3, f"mismatch vs matched-precision reference: {err_matched}"

    # Loose check vs. the exact f32 PyTorch semantics (tolerance accounts for the
    # bf16 MXU operand quantization + the collapsed-affine rounding-order change).
    ref_exact = jax.block_until_ready(fnn_model_forward_ref(U, umask, raw_params))
    err_exact = float(jnp.max(jnp.abs(log_prob - ref_exact)))
    assert err_exact < 1e-1, f"mismatch vs exact f32 reference: {err_exact}"

    # log_softmax rows should exponentiate-and-sum to ~1
    row_sum_err = float(jnp.max(jnp.abs(jnp.sum(jnp.exp(log_prob), axis=-1) - 1.0)))
    assert row_sum_err < 1e-4, f"log_softmax rows not normalized: {row_sum_err}"

    print("KERNEL_OK")
</pallas_src>

<mosaic_0001>
module attributes {stable_mosaic.version = 11 : i64} {
  func.func @fnn_fused_kernel(%arg0: i32, %arg1: memref<8x32xbf16, #tpu.memory_space<vmem>>, %arg2: memref<32x32xbf16, #tpu.memory_space<vmem>>, %arg3: memref<1x32xf32, #tpu.memory_space<vmem>>, %arg4: memref<32x128xbf16, #tpu.memory_space<vmem>>, %arg5: memref<1x128xf32, #tpu.memory_space<vmem>>, %arg6: memref<8x128xf32, #tpu.memory_space<vmem>>) attributes {dimension_semantics = [#tpu.dimension_semantics<parallel>], iteration_bounds = array<i64: 2>, scalar_prefetch = 0 : i64, scratch_operands = 0 : i64, tpu.core_type = #tpu.core_type<tc>, window_params = [{transform_indices = @transform_0, window_bounds = array<i64: 8, 32>}, {pipeline_mode = #tpu.pipeline_mode<synchronous>, transform_indices = @transform_1, window_bounds = array<i64: 32, 32>}, {pipeline_mode = #tpu.pipeline_mode<synchronous>, transform_indices = @transform_2, window_bounds = array<i64: 1, 32>}, {pipeline_mode = #tpu.pipeline_mode<synchronous>, transform_indices = @transform_3, window_bounds = array<i64: 32, 128>}, {pipeline_mode = #tpu.pipeline_mode<synchronous>, transform_indices = @transform_4, window_bounds = array<i64: 1, 128>}, {transform_indices = @transform_5, window_bounds = array<i64: 8, 128>}]} {
    %c0 = arith.constant 0 : index
    %c0_0 = arith.constant 0 : index
    %0 = vector.load %arg1[%c0, %c0_0] : memref<8x32xbf16, #tpu.memory_space<vmem>>, vector<8x32xbf16>
    %c0_1 = arith.constant 0 : index
    %c0_2 = arith.constant 0 : index
    %1 = vector.load %arg2[%c0_1, %c0_2] : memref<32x32xbf16, #tpu.memory_space<vmem>>, vector<32x32xbf16>
    %cst = arith.constant dense<0.000000e+00> : vector<8x32xf32>
    %2 = tpu.matmul %0, %1, %cst {dimension_numbers = #tpu.dot_dimension_numbers<[1], [0], [0], [1], [0, 0, 1, 1], [], []>} : vector<8x32xbf16>, vector<32x32xbf16>, vector<8x32xf32> -> vector<8x32xf32>
    %c0_3 = arith.constant 0 : index
    %c0_4 = arith.constant 0 : index
    %3 = vector.load %arg3[%c0_3, %c0_4] : memref<1x32xf32, #tpu.memory_space<vmem>>, vector<1x32xf32>
    %4 = vector.broadcast %3 : vector<1x32xf32> to vector<8x32xf32>
    %5 = arith.addf %2, %4 : vector<8x32xf32>
    %cst_5 = arith.constant 0.000000e+00 : f32
    %6 = vector.broadcast %cst_5 : f32 to vector<8x32xf32>
    %7 = arith.maximumf %5, %6 : vector<8x32xf32>
    %8 = arith.truncf %7 : vector<8x32xf32> to vector<8x32xbf16>
    %c0_6 = arith.constant 0 : index
    %c0_7 = arith.constant 0 : index
    %9 = vector.load %arg4[%c0_6, %c0_7] : memref<32x128xbf16, #tpu.memory_space<vmem>>, vector<32x128xbf16>
    %cst_8 = arith.constant dense<0.000000e+00> : vector<8x128xf32>
    %10 = tpu.matmul %8, %9, %cst_8 {dimension_numbers = #tpu.dot_dimension_numbers<[1], [0], [0], [1], [0, 0, 1, 1], [], []>} : vector<8x32xbf16>, vector<32x128xbf16>, vector<8x128xf32> -> vector<8x128xf32>
    %c0_9 = arith.constant 0 : index
    %c0_10 = arith.constant 0 : index
    %11 = vector.load %arg5[%c0_9, %c0_10] : memref<1x128xf32, #tpu.memory_space<vmem>>, vector<1x128xf32>
    %12 = vector.broadcast %11 : vector<1x128xf32> to vector<8x128xf32>
    %13 = arith.addf %10, %12 : vector<8x128xf32>
    %cst_11 = arith.constant dense<0xFF800000> : vector<8xf32>
    %14 = vector.multi_reduction <maximumf>, %13, %cst_11 [1] : vector<8x128xf32> to vector<8xf32>
    %15 = vector.shape_cast %14 : vector<8xf32> to vector<8x1xf32>
    %16 = vector.broadcast %15 : vector<8x1xf32> to vector<8x128xf32>
    %17 = arith.subf %13, %16 : vector<8x128xf32>
    %18 = math.exp %17 : vector<8x128xf32>
    %cst_12 = arith.constant dense<0.000000e+00> : vector<8xf32>
    %19 = vector.multi_reduction <add>, %18, %cst_12 [1] : vector<8x128xf32> to vector<8xf32>
    %20 = vector.shape_cast %19 : vector<8xf32> to vector<8x1xf32>
    %21 = math.log %20 : vector<8x1xf32>
    %22 = vector.broadcast %21 : vector<8x1xf32> to vector<8x128xf32>
    %23 = arith.subf %17, %22 : vector<8x128xf32>
    %c0_13 = arith.constant 0 : index
    %c0_14 = arith.constant 0 : index
    %24 = vector.load %arg6[%c0_13, %c0_14] : memref<8x128xf32, #tpu.memory_space<vmem>>, vector<8x128xf32>
    tpu.vector_store %arg6[%c0_13, %c0_14], %23 {strides = array<i32>} : memref<8x128xf32, #tpu.memory_space<vmem>>, vector<8x128xf32>,
    return
  }
  func.func @transform_0(%arg0: i32) -> (i32, i32) {
    %c0_i32 = arith.constant 0 : i32
    %c0_i32_0 = arith.constant 0 : i32
    return %arg0, %c0_i32 : i32, i32
  }
  func.func @transform_1(%arg0: i32) -> (i32, i32) {
    %c0_i32 = arith.constant 0 : i32
    %c0_i32_0 = arith.constant 0 : i32
    %c0_i32_1 = arith.constant 0 : i32
    return %c0_i32, %c0_i32_0 : i32, i32
  }
  func.func @transform_2(%arg0: i32) -> (i32, i32) {
    %c0_i32 = arith.constant 0 : i32
    %c0_i32_0 = arith.constant 0 : i32
    %c0_i32_1 = arith.constant 0 : i32
    return %c0_i32, %c0_i32_0 : i32, i32
  }
  func.func @transform_3(%arg0: i32) -> (i32, i32) {
    %c0_i32 = arith.constant 0 : i32
    %c0_i32_0 = arith.constant 0 : i32
    %c0_i32_1 = arith.constant 0 : i32
    return %c0_i32, %c0_i32_0 : i32, i32
  }
  func.func @transform_4(%arg0: i32) -> (i32, i32) {
    %c0_i32 = arith.constant 0 : i32
    %c0_i32_0 = arith.constant 0 : i32
    %c0_i32_1 = arith.constant 0 : i32
    return %c0_i32, %c0_i32_0 : i32, i32
  }
  func.func @transform_5(%arg0: i32) -> (i32, i32) {
    %c0_i32 = arith.constant 0 : i32
    %c0_i32_0 = arith.constant 0 : i32
    return %arg0, %c0_i32 : i32, i32
  }
}

</mosaic_0001>

<llo_original>
// kernel: tpu_custom_call.1
$region0: #{tpu_custom_call.1}
  #allocation0 [shape = 'u32[]', space=smem, size = 0x4, offset = 0x4, fixed_abs, tag = 'smem constant byte address 0x4 - core index']
  #allocation1 [shape = 'u32[144,128]{1,0:T(1,128)}', space=vmem, size = 0x12000, scoped, tag = 'internal scratch']
  %s0 = inlined_call_operand.hbm [shape: bf16[16,32], index: 0, kind: input, shape index: {}]
  %s1 = inlined_call_operand.hbm [shape: bf16[32,32], index: 1, kind: input, shape index: {}]
  %s2 = inlined_call_operand.vmem [shape: f32[1,32], index: 2, kind: input, shape index: {}]
  %s3 = inlined_call_operand.hbm [shape: bf16[32,128], index: 3, kind: input, shape index: {}]
  %s4 = inlined_call_operand.vmem [shape: f32[1,128], index: 4, kind: input, shape index: {}]
  %s5 = inlined_call_operand.hbm [shape: f32[16,128], index: 5, kind: output, shape index: {}]
  %s6 = sld [smem:[#allocation0]]
  $region65: #{tpu_custom_call.1} parent=0
    _
  %s8 = ssub.s32 1, %s6
  %s9 = scalar_select 0, %s8, %s6
  $region1: #{tpu_custom_call.1} parent=0
    #allocation2 [shape = 'u8[4096]{0}', space=vmem, size = 0x1000, scoped, tag = 'input window, operand 0']
    #allocation3 [shape = 's32[2]{0}', space=sflag, size = 0x8, scoped, tag = 'scoped memory for tpu_custom_call.1']
    #allocation4 [shape = 's32[2]{0}', space=sflag, size = 0x8, scoped, tag = 'scoped memory for tpu_custom_call.1']
    #allocation5 [shape = 'u8[8192]{0}', space=vmem, size = 0x2000, scoped, tag = 'input window, operand 1, single buffered']
    #allocation6 [shape = 's32[1]{0}', space=sflag, size = 0x4, scoped, tag = 'scoped memory for tpu_custom_call.1']
    #allocation7 [shape = 'u8[8192]{0}', space=vmem, size = 0x2000, scoped, tag = 'input window, operand 3, single buffered']
    #allocation8 [shape = 'u8[8192]{0}', space=vmem, size = 0x2000, scoped, tag = 'output window, operand 0']
    %10 = vsyncpa [#allocation3], 0
    %s11 = scalar_lea.sflag [#allocation3], 1
    %12 = vsyncpa %s11, 0
    %13 = vsyncpa [#allocation6], 0
    %14 = vsyncpa [#allocation4], 0
    %s15 = scalar_lea.sflag [#allocation4], 1
    %16 = vsyncpa %s15, 0
    loop: start=0, step=1, limit=4
    $region2: #{tpu_custom_call.1} parent=1 // loop_pre_header
      _
    $region3: #{tpu_custom_call.1} parent=1 // loop_header
      %s18 = sphi 0, %s22
      %p19 = scmp.ge.s32.totalorder %s18, 4
      %s28 = sphi 0, %s30
      %s31 = sphi 0, %s28
      %s32 = sphi 0, %s31
      %s48 = sphi 0, %s32
      %s52 = sphi 0, %s52
      %s54 = sphi 0, %s52
      %s55 = sphi 0, %s54
      %s69 = sphi 0, %s55
      %s73 = sphi 0, %s73
      %s75 = sphi 0, %s73
      %s76 = sphi 0, %s75
      %s90 = sphi 0, %s76
      %s94 = sphi 0, %s94
      %s96 = sphi 0, %s94
      %s97 = sphi 0, %s96
      %s111 = sphi 0, %s97
      %s115 = sphi 0, %s115
      %s117 = sphi 0, %s115
      %s118 = sphi 0, %s117
      %s132 = sphi 0, %s118
      %s138 = sphi 0, %s140
      %s141 = sphi 0, %s138
      %s142 = sphi 0, %s141
      %s158 = sphi 0, %s142
    $region4: #{tpu_custom_call.1} parent=1 // loop_header_branch
      %21 = sbr.rel (%p19) target = $region8
    $region5: #{tpu_custom_call.1} parent=1 // loop_body
      %s23 = ssub.s32 %s18, 1
      %s24 = ssub.s32 %s18, 2
      %s25 = sadd.s32 %s18, 1
      %s26 = ssub.s32 %s18, %s25
      %p27 = scmp.eq.s32.totalorder %s26, 0
      %s29 = sadd.s32 %s28, 1
      %s30 = scalar_select %p27, %s28, %s29
      %p33 = pneg %p27
      %p34 = scmp.eq.s32.totalorder %s18, 1
      %p35 = por %p33, %p34
      %p36 = scmp.ne.s32.totalorder %s28, %s31
      %p37 = scmp.eq.s32.totalorder %s18, 0
      %p38 = por %p36, %p37
      %p39 = scmp.ne.s32.totalorder %s28, %s31
      %p40 = scmp.eq.s32.totalorder %s23, 1
      %p41 = por %p39, %p40
      %p42 = scmp.ne.s32.totalorder %s31, %s32
      %p43 = scmp.eq.s32.totalorder %s23, 0
      %p44 = por %p42, %p43
      %p45 = scmp.ne.s32.totalorder %s31, %s32
      %p46 = scmp.eq.s32.totalorder %s24, 1
      %p47 = por %p45, %p46
      %p49 = scmp.ne.s32.totalorder %s32, %s48
      %p50 = scmp.eq.s32.totalorder %s24, 0
      %p51 = por %p49, %p50
      %s53 = sadd.s32 %s52, 1
      %p56 = scmp.eq.s32.totalorder %s18, 1
      %p57 = scmp.ne.s32.totalorder %s52, %s54
      %p58 = scmp.eq.s32.totalorder %s18, 0
      %p59 = por %p57, %p58
      %p60 = scmp.ne.s32.totalorder %s52, %s54
      %p61 = scmp.eq.s32.totalorder %s23, 1
      %p62 = por %p60, %p61
      %p63 = scmp.ne.s32.totalorder %s54, %s55
      %p64 = scmp.eq.s32.totalorder %s23, 0
      %p65 = por %p63, %p64
      %p66 = scmp.ne.s32.totalorder %s54, %s55
      %p67 = scmp.eq.s32.totalorder %s24, 1
      %p68 = por %p66, %p67
      %p70 = scmp.ne.s32.totalorder %s55, %s69
      %p71 = scmp.eq.s32.totalorder %s24, 0
      %p72 = por %p70, %p71
      %s74 = sadd.s32 %s73, 1
      %p77 = scmp.eq.s32.totalorder %s18, 1
      %p78 = scmp.ne.s32.totalorder %s73, %s75
      %p79 = scmp.eq.s32.totalorder %s18, 0
      %p80 = por %p78, %p79
      %p81 = scmp.ne.s32.totalorder %s73, %s75
      %p82 = scmp.eq.s32.totalorder %s23, 1
      %p83 = por %p81, %p82
      %p84 = scmp.ne.s32.totalorder %s75, %s76
      %p85 = scmp.eq.s32.totalorder %s23, 0
      %p86 = por %p84, %p85
      %p87 = scmp.ne.s32.totalorder %s75, %s76
      %p88 = scmp.eq.s32.totalorder %s24, 1
      %p89 = por %p87, %p88
      %p91 = scmp.ne.s32.totalorder %s76, %s90
      %p92 = scmp.eq.s32.totalorder %s24, 0
      %p93 = por %p91, %p92
      %s95 = sadd.s32 %s94, 1
      %p98 = scmp.eq.s32.totalorder %s18, 1
      %p99 = scmp.ne.s32.totalorder %s94, %s96
      %p100 = scmp.eq.s32.totalorder %s18, 0
      %p101 = por %p99, %p100
      %p102 = scmp.ne.s32.totalorder %s94, %s96
      %p103 = scmp.eq.s32.totalorder %s23, 1
      %p104 = por %p102, %p103
      %p105 = scmp.ne.s32.totalorder %s96, %s97
      %p106 = scmp.eq.s32.totalorder %s23, 0
      %p107 = por %p105, %p106
      %p108 = scmp.ne.s32.totalorder %s96, %s97
      %p109 = scmp.eq.s32.totalorder %s24, 1
      %p110 = por %p108, %p109
      %p112 = scmp.ne.s32.totalorder %s97, %s111
      %p113 = scmp.eq.s32.totalorder %s24, 0
      %p114 = por %p112, %p113
      %s116 = sadd.s32 %s115, 1
      %p119 = scmp.eq.s32.totalorder %s18, 1
      %p120 = scmp.ne.s32.totalorder %s115, %s117
      %p121 = scmp.eq.s32.totalorder %s18, 0
      %p122 = por %p120, %p121
      %p123 = scmp.ne.s32.totalorder %s115, %s117
      %p124 = scmp.eq.s32.totalorder %s23, 1
      %p125 = por %p123, %p124
      %p126 = scmp.ne.s32.totalorder %s117, %s118
      %p127 = scmp.eq.s32.totalorder %s23, 0
      %p128 = por %p126, %p127
      %p129 = scmp.ne.s32.totalorder %s117, %s118
      %p130 = scmp.eq.s32.totalorder %s24, 1
      %p131 = por %p129, %p130
      %p133 = scmp.ne.s32.totalorder %s118, %s132
      %p134 = scmp.eq.s32.totalorder %s24, 0
      %p135 = por %p133, %p134
      %s136 = ssub.s32 %s18, %s25
      %p137 = scmp.eq.s32.totalorder %s136, 0
      %s139 = sadd.s32 %s138, 1
      %s140 = scalar_select %p137, %s138, %s139
      %p143 = pneg %p137
      %p144 = scmp.eq.s32.totalorder %s18, 1
      %p145 = por %p143, %p144
      %p146 = scmp.ne.s32.totalorder %s138, %s141
      %p147 = scmp.eq.s32.totalorder %s18, 0
      %p148 = por %p146, %p147
      %p149 = scmp.ne.s32.totalorder %s138, %s141
      %p150 = scmp.eq.s32.totalorder %s23, 1
      %p151 = por %p149, %p150
      %p152 = scmp.ne.s32.totalorder %s141, %s142
      %p153 = scmp.eq.s32.totalorder %s23, 0
      %p154 = por %p152, %p153
      %p155 = scmp.ne.s32.totalorder %s141, %s142
      %p156 = scmp.eq.s32.totalorder %s24, 1
      %p157 = por %p155, %p156
      %p159 = scmp.ne.s32.totalorder %s142, %s158
      %p160 = scmp.eq.s32.totalorder %s24, 0
      %p161 = por %p159, %p160
      %p162 = scmp.le.s32.totalorder 1, %s18
      %p163 = scmp.lt.s32.totalorder %s18, 3
      %p164 = pnand %p162, %p163
      %p165 = pneg %p164
      // Predicated region
      $region9: #{tpu_custom_call.1} parent=5 // pred_check
        _
      $region10: #{tpu_custom_call.1} parent=5 // pred_check_branch
        %167 = sbr.rel (%p164) target = $region12
      $region11: #{tpu_custom_call.1} parent=5 // pred_region
        %s168 = ssub.s32 %s18, 1
        // Predicated region
        $region13: #{tpu_custom_call.1} parent=11 // pred_check
          %p169 = pneg %p65
        $region14: #{tpu_custom_call.1} parent=11 // pred_check_branch
          %171 = sbr.rel (%p169) target = $region16
        $region15: #{tpu_custom_call.1} parent=11 // pred_region
          %s173 = ssub.s32 256, 256
          %174 = vsyncadd [#allocation6], %s173
          %s175 = sshll.u32 [#allocation5], 4
          %s176 = int_to_ptr.vmem [resolvable:$true] %s175
          %181 = dma.hbm_to_vmem [thread:$0]  %s1, 256, %s176, [#allocation6], 64, 64, 4
        $region16: #{tpu_custom_call.1} parent=11 // pred_fallthru
          _
        // Predicated region
        $region17: #{tpu_custom_call.1} parent=11 // pred_check
          %p182 = pneg %p86
        $region18: #{tpu_custom_call.1} parent=11 // pred_check_branch
          %184 = sbr.rel (%p182) target = $region20
        $region19: #{tpu_custom_call.1} parent=11 // pred_region
          _
        $region20: #{tpu_custom_call.1} parent=11 // pred_fallthru
          _
        // Predicated region
        $region21: #{tpu_custom_call.1} parent=11 // pred_check
          %p185 = pneg %p107
        $region22: #{tpu_custom_call.1} parent=11 // pred_check_branch
          %187 = sbr.rel (%p185) target = $region24
        $region23: #{tpu_custom_call.1} parent=11 // pred_region
          %s189 = ssub.s32 256, 256
          %190 = vsyncadd [#allocation6], %s189
          %s191 = sshll.u32 [#allocation7], 4
          %s192 = int_to_ptr.vmem [resolvable:$true] %s191
          %197 = dma.hbm_to_vmem [thread:$0]  %s3, 256, %s192, [#allocation6], 64, 64, 4
        $region24: #{tpu_custom_call.1} parent=11 // pred_fallthru
          _
        // Predicated region
        $region25: #{tpu_custom_call.1} parent=11 // pred_check
          %p198 = pneg %p128
        $region26: #{tpu_custom_call.1} parent=11 // pred_check_branch
          %200 = sbr.rel (%p198) target = $region28
        $region27: #{tpu_custom_call.1} parent=11 // pred_region
          _
        $region28: #{tpu_custom_call.1} parent=11 // pred_fallthru
          _
      $region12: #{tpu_custom_call.1} parent=5 // pred_fallthru
        _
      %p201 = scmp.lt.s32.totalorder %s18, 2
      // Predicated region
      $region29: #{tpu_custom_call.1} parent=5 // pred_check
        %p202 = pneg %p201
      $region30: #{tpu_custom_call.1} parent=5 // pred_check_branch
        %204 = sbr.rel (%p202) target = $region32
      $region31: #{tpu_custom_call.1} parent=5 // pred_region
        // Predicated region
        $region33: #{tpu_custom_call.1} parent=31 // pred_check
          %p205 = pneg %p38
        $region34: #{tpu_custom_call.1} parent=31 // pred_check_branch
          %207 = sbr.rel (%p205) target = $region36
        $region35: #{tpu_custom_call.1} parent=31 // pred_region
          %s208 = sand.u32 %s28, 1
          %s209 = scalar_lea.sflag [#allocation3], %s208
          %s210 = sand.u32 %s28, 1
          %s211 = smul.addr %s210, 4
          %s212 = scalar_lea.vmem [#allocation2], %s211
          %s214 = ssub.s32 64, 64
          %215 = vsyncadd %s209, %s214
          %s216 = smul.addr %s18, 64
          %s217 = scalar_lea.hbm %s0, %s216
          %s219 = sshll.u32 %s212, 4
          %s220 = int_to_ptr.vmem [resolvable:$true] %s219
          %222 = dma.hbm_to_vmem [thread:$0]  %s217, 64, %s220, %s209
        $region36: #{tpu_custom_call.1} parent=31 // pred_fallthru
          _
      $region32: #{tpu_custom_call.1} parent=5 // pred_fallthru
        _
      %p223 = scmp.le.s32.totalorder 1, %s18
      %p224 = scmp.lt.s32.totalorder %s18, 3
      %p225 = pnand %p223, %p224
      %p226 = pneg %p225
      // Predicated region
      $region37: #{tpu_custom_call.1} parent=5 // pred_check
        _
      $region38: #{tpu_custom_call.1} parent=5 // pred_check_branch
        %228 = sbr.rel (%p225) target = $region40
      $region39: #{tpu_custom_call.1} parent=5 // pred_region
        %s229 = ssub.s32 %s18, 1
        %s230 = sand.u32 %s31, 1
        %s231 = scalar_lea.sflag [#allocation3], %s230
        %s232 = sand.u32 %s31, 1
        %s233 = smul.addr %s232, 4
        %s234 = scalar_lea.vmem [#allocation2], %s233
        // Predicated region
        $region41: #{tpu_custom_call.1} parent=39 // pred_check
          %p235 = pneg %p44
        $region42: #{tpu_custom_call.1} parent=39 // pred_check_branch
          %237 = sbr.rel (%p235) target = $region44
        $region43: #{tpu_custom_call.1} parent=39 // pred_region
          %238 = dma.done %s231, 64
        $region44: #{tpu_custom_call.1} parent=39 // pred_fallthru
          _
        // Predicated region
        $region45: #{tpu_custom_call.1} parent=39 // pred_check
          %p239 = pneg %p65
        $region46: #{tpu_custom_call.1} parent=39 // pred_check_branch
          %241 = sbr.rel (%p239) target = $region48
        $region47: #{tpu_custom_call.1} parent=39 // pred_region
          %242 = dma.done [#allocation6], 256
        $region48: #{tpu_custom_call.1} parent=39 // pred_fallthru
          _
        // Predicated region
        $region49: #{tpu_custom_call.1} parent=39 // pred_check
          %p243 = pneg %p107
        $region50: #{tpu_custom_call.1} parent=39 // pred_check_branch
          %245 = sbr.rel (%p243) target = $region52
        $region51: #{tpu_custom_call.1} parent=39 // pred_region
          %246 = dma.done [#allocation6], 256
        $region52: #{tpu_custom_call.1} parent=39 // pred_fallthru
          _
        %s247 = sand.u32 %s31, 1
        %s248 = scalar_lea.sflag [#allocation3], %s247
        %s249 = sand.u32 %s31, 1
        %s250 = smul.addr %s249, 4
        %s251 = scalar_lea.vmem [#allocation2], %s250
        %p252 = pneg %p44
        %p253 = pneg %p41
        %p254 = pneg %p65
        %p255 = pneg %p62
        %p256 = pneg %p86
        %p257 = pneg %p83
        %p258 = pneg %p107
        %p259 = pneg %p104
        %p260 = pneg %p128
        %p261 = pneg %p125
        %p262 = pneg %p154
        %p263 = pneg %p151
        %s264 = sand.u32 %s141, 1
        %s265 = scalar_lea.sflag [#allocation4], %s264
        %s266 = sand.u32 %s141, 1
        %s267 = smul.addr %s266, 8
        %s268 = scalar_lea.vmem [#allocation8], %s267
        %v270 = vld [vmem:[%s234] sm:$0xf]
        %v271 = vld [vmem:[#allocation5] sm:$0xf]
        %v272 = vld [vmem:[#allocation5 + $0x4] sm:$0xf]
        %v273 = vld [vmem:[#allocation5 + $0x8] sm:$0xf]
        %v274 = vld [vmem:[#allocation5 + $0xc] sm:$0xf]
        %v275 = vld [vmem:[%s2] sm:$0x1]
        %v277 = vlaneseq
        %v278 = vshrl.u32 %v277, 7
        %v279 = vsub.s32 0, %v278
        %v280 = vrot.slane %v275, %v279
        %v286 = vunpack.c.l.b16 %v271
        %v287 = vunpack.c.l.b16 %v272
        %v288 = vunpack.c.l.b16 %v273
        %v289 = vunpack.c.l.b16 %v274
        %v290 = vpack.c.b16 %v287, %v286
        %v291 = vpack.c.b16 %v289, %v288
        %vm294 = vcmask 261120
        %v296 = vsel %vm294, %v270, 0
        %298 = vmatprep.subr.bf16.mxu0 0
        %299 = vmatpush1.bf16.msra.mxu0 0
        %300 = vmatprep.subr.bf16.mxu0 0
        %301 = vmatpush1.bf16.msra.mxu0 0
        %302 = vmatprep.subr.bf16.mxu0 0
        %303 = vmatpush1.bf16.msra.mxu0 0
        %304 = vmatprep.subr.bf16.mxu0 0
        %305 = vmatpush1.bf16.msra.mxu0 0
        %306 = vmatprep.subr.bf16.mxu0 0
        %307 = vmatpush1.bf16.msra.mxu0 0
        %308 = vmatprep.subr.bf16.mxu0 0
        %309 = vmatpush1.bf16.msra.mxu0 0
        %310 = vmatprep.subr.bf16.mxu0 0
        %311 = vmatpush1.bf16.msra.mxu0 %v291
        %312 = vmatprep.subr.bf16.mxu0 0
        %313 = vmatpush1.bf16.msra.mxu0 %v290
        %314 = vmatprep.subr.bf16.mxu0 0
        %315 = vmatpush2.bf16.msra.mxu0 0
        %316 = vmatprep.subr.bf16.mxu0 0
        %317 = vmatpush2.bf16.msra.mxu0 0
        %318 = vmatprep.subr.bf16.mxu0 0
        %319 = vmatpush2.bf16.msra.mxu0 0
        %320 = vmatprep.subr.bf16.mxu0 0
        %321 = vmatpush2.bf16.msra.mxu0 0
        %322 = vmatprep.subr.bf16.mxu0 0
        %323 = vmatpush2.bf16.msra.mxu0 0
        %324 = vmatprep.subr.bf16.mxu0 0
        %325 = vmatpush2.bf16.msra.mxu0 0
        %326 = vmatprep.subr.bf16.mxu0 0
        %327 = vmatpush2.bf16.msra.mxu0 0
        %328 = vmatprep.subr.bf16.mxu0 0
        %329 = vmatpush2.bf16.msra.mxu0 0
        %330 = vmatprep.mubr.bf16.mxu0 0
        %331 = vmatmul.mubr.bf16.gmra.mxu0 %v296
        %v332 = vpop.f32.mrf.mxu0
        %v333 = vadd.f32 %v280, %v332
        %v334 = vpop.f32.mrf.mxu0
        %v335 = vpop.f32.mrf.mxu0
        %v336 = vpop.f32.mrf.mxu0
        %337 = vdwg.mxu0
        %v338 = vmax.f32 %v333, 0.0
        %v339 = vpack.c.bf16 %v338, %v338
        %v340 = vld [vmem:[#allocation7] sm:$0xf]
        %v341 = vld [vmem:[#allocation7 + $0x4] sm:$0xf]
        %v342 = vld [vmem:[#allocation7 + $0x8] sm:$0xf]
        %v343 = vld [vmem:[#allocation7 + $0xc] sm:$0xf]
        %v344 = vld [vmem:[%s4] sm:$0x1]
        %v346 = vlaneseq
        %v347 = vshrl.u32 %v346, 7
        %v348 = vsub.s32 0, %v347
        %v349 = vrot.slane %v344, %v348
        %v355 = vunpack.c.l.b16 %v340
        %v356 = vunpack.c.l.b16 %v341
        %v357 = vunpack.c.l.b16 %v342
        %v358 = vunpack.c.l.b16 %v343
        %v359 = vpack.c.b16 %v356, %v355
        %v360 = vpack.c.b16 %v358, %v357
        %v364 = vsel %vm294, %v339, 0
        %366 = vmatprep.subr.bf16.mxu0 0
        %367 = vmatpush1.bf16.msra.mxu0 0
        %368 = vmatprep.subr.bf16.mxu0 0
        %369 = vmatpush1.bf16.msra.mxu0 0
        %370 = vmatprep.subr.bf16.mxu0 0
        %371 = vmatpush1.bf16.msra.mxu0 0
        %372 = vmatprep.subr.bf16.mxu0 0
        %373 = vmatpush1.bf16.msra.mxu0 0
        %374 = vmatprep.subr.bf16.mxu0 0
        %375 = vmatpush1.bf16.msra.mxu0 0
        %376 = vmatprep.subr.bf16.mxu0 0
        %377 = vmatpush1.bf16.msra.mxu0 0
        %378 = vmatprep.subr.bf16.mxu0 0
        %379 = vmatpush1.bf16.msra.mxu0 %v360
        %380 = vmatprep.subr.bf16.mxu0 0
        %381 = vmatpush1.bf16.msra.mxu0 %v359
        %382 = vmatprep.subr.bf16.mxu0 0
        %383 = vmatpush2.bf16.msra.mxu0 0
        %384 = vmatprep.subr.bf16.mxu0 0
        %385 = vmatpush2.bf16.msra.mxu0 0
        %386 = vmatprep.subr.bf16.mxu0 0
        %387 = vmatpush2.bf16.msra.mxu0 0
        %388 = vmatprep.subr.bf16.mxu0 0
        %389 = vmatpush2.bf16.msra.mxu0 0
        %390 = vmatprep.subr.bf16.mxu0 0
        %391 = vmatpush2.bf16.msra.mxu0 0
        %392 = vmatprep.subr.bf16.mxu0 0
        %393 = vmatpush2.bf16.msra.mxu0 0
        %394 = vmatprep.subr.bf16.mxu0 0
        %395 = vmatpush2.bf16.msra.mxu0 0
        %396 = vmatprep.subr.bf16.mxu0 0
        %397 = vmatpush2.bf16.msra.mxu0 0
        %398 = vmatprep.mubr.bf16.mxu0 0
        %399 = vmatmul.mubr.bf16.gmra.mxu0 %v364
        %v400 = vpop.f32.mrf.mxu0
        %v401 = vadd.f32 %v349, %v400
        %v402 = vpop.f32.mrf.mxu0
        %v403 = vpop.f32.mrf.mxu0
        %v404 = vpop.f32.mrf.mxu0
        %405 = vdwg.mxu0
        %406 = vmax.xlane.f32.xlu0 %v401
        %v407 = vpop.xlane.xlu0 %406
        %v408 = vsub.f32 %v401, %v407
        %v409 = vmul.f32 %v408, 1.442695
        %v410 = vpow.pop %v409
        %411 = vadd.xlane.f32.xlu0 %v410
        %v412 = vpop.xlane.xlu0 %411
        %v413 = vlog2.pop %v412
        %v414 = vmul.f32 %v413, 0.6931472
        %v415 = vsub.f32 %v408, %v414
        %416 = vst [vmem:[%s268] sm:$0xff] %v415
        %s417 = sand.u32 %s141, 1
        %s418 = scalar_lea.sflag [#allocation4], %s417
        %s419 = sand.u32 %s141, 1
        %s420 = smul.addr %s419, 8
        %s421 = scalar_lea.vmem [#allocation8], %s420
        // Predicated region
        $region53: #{tpu_custom_call.1} parent=39 // pred_check
          %p422 = pneg %p151
        $region54: #{tpu_custom_call.1} parent=39 // pred_check_branch
          %424 = sbr.rel (%p422) target = $region56
        $region55: #{tpu_custom_call.1} parent=39 // pred_region
          %s426 = ssub.s32 128, 128
          %427 = vsyncadd %s418, %s426
          %s428 = smul.addr %s23, 128
          %s429 = scalar_lea.hbm %s5, %s428
          %s431 = sshll.u32 %s421, 4
          %s432 = int_to_ptr.vmem [resolvable:$true] %s431
          %434 = dma.vmem_to_hbm [thread:$0]  %s432, 128, %s429, %s418
        $region56: #{tpu_custom_call.1} parent=39 // pred_fallthru
          _
      $region40: #{tpu_custom_call.1} parent=5 // pred_fallthru
        _
      %p435 = scmp.le.s32.totalorder 2, %s18
      // Predicated region
      $region57: #{tpu_custom_call.1} parent=5 // pred_check
        %p436 = pneg %p435
      $region58: #{tpu_custom_call.1} parent=5 // pred_check_branch
        %438 = sbr.rel (%p436) target = $region60
      $region59: #{tpu_custom_call.1} parent=5 // pred_region
        %s439 = ssub.s32 %s18, 2
        // Predicated region
        $region61: #{tpu_custom_call.1} parent=59 // pred_check
          %p440 = pneg %p157
        $region62: #{tpu_custom_call.1} parent=59 // pred_check_branch
          %442 = sbr.rel (%p440) target = $region64
        $region63: #{tpu_custom_call.1} parent=59 // pred_region
          %s443 = sand.u32 %s142, 1
          %s444 = scalar_lea.sflag [#allocation4], %s443
          %s445 = sand.u32 %s142, 1
          %s446 = smul.addr %s445, 8
          %s447 = scalar_lea.vmem [#allocation8], %s446
          %448 = dma.done %s444, 128
        $region64: #{tpu_custom_call.1} parent=59 // pred_fallthru
          _
      $region60: #{tpu_custom_call.1} parent=5 // pred_fallthru
        _
    $region6: #{tpu_custom_call.1} parent=1 // loop_footer
      %s22 = sadd.s32 1, %s18
    $region7: #{tpu_custom_call.1} parent=1 // loop_footer_branch
      %17 = sbr.rel target = $region3
    $region8: #{tpu_custom_call.1} parent=1 // loop_exit
      _
    %449 = vsyncpa [#allocation3], 1
    %s450 = scalar_lea.sflag [#allocation3], 1
    %451 = vsyncpa %s450, 1
    %452 = vsyncpa [#allocation6], 1
    %453 = vsyncpa [#allocation4], 1
    %s454 = scalar_lea.sflag [#allocation4], 1
    %455 = vsyncpa %s454, 1

</llo_original>
